<compile_context>
chip_gen: v7x
topology: tpu7x:2x2x1
jax: 0.10.0
libtpu: 0.0.40
codegen_flags: <defaults>
</compile_context>

<pallas_src>
import functools

import jax
import jax.numpy as jnp
from jax.experimental import pallas as pl
from jax.experimental.pallas import tpu as pltpu


def _channel_attention_kernel(beta_ref, x_ref, o_ref, *, row_tile):
    # beta_ref: SMEM (1,) f32
    # x_ref:    VMEM (1, C, HW)      (full batch-element tile)
    # o_ref:    VMEM (1, row_tile, HW)
    r = pl.program_id(1)
    row0 = pl.multiple_of(r * row_tile, row_tile)
    beta = beta_ref[0]

    @pl.when(beta == 0.0)
    def _copy_only():
        # beta * feat_e + feat == feat when beta == 0 (the default init):
        # skip both matmuls and the softmax; pure HBM-roofline copy.
        o_ref[0] = x_ref[0, pl.ds(row0, row_tile), :]

    @pl.when(beta != 0.0)
    def _attend():
        feat = x_ref[0].astype(jnp.float32)                                  # (C, HW)
        feat_rows = x_ref[0, pl.ds(row0, row_tile), :].astype(jnp.float32)   # (tC, HW)

        # Gram matrix kept in f32: its absolute values feed exp(), so bf16
        # operand error (~0.4% of O(HW)) would visibly perturb the softmax.
        attn = jax.lax.dot_general(
            feat_rows, feat,
            dimension_numbers=(((1,), (1,)), ((), ())),
            preferred_element_type=jnp.float32,
        )                                                                    # (tC, C)

        # softmax(rowmax(attn) - attn) == exp(rowmin(attn) - attn) / sum(...)
        # (single cross-lane reduce; all exponents <= 0, numerically stable)
        logits = jnp.min(attn, axis=-1, keepdims=True) - attn
        e = jnp.exp(logits)
        # approx=True -> EUP vrcp slot; essentially free vs. a VALU divide.
        p = e * pl.reciprocal(jnp.sum(e, axis=-1, keepdims=True), approx=True)

        # Probability-weighted mix of feature rows: convex combination, so the
        # bf16 operand error is bounded; MXU is bf16-native on v5e/v6e/v7x.
        feat_e = jnp.dot(p.astype(jnp.bfloat16), feat.astype(jnp.bfloat16),
                         preferred_element_type=jnp.float32)                 # (tC, HW)

        o_ref[0] = (beta * feat_e + feat_rows).astype(o_ref.dtype)


def channel_attention_module(x, beta):
    """x: (B, C, H, W) float32 (NCHW).  beta: (1,) float32.  Returns (B, C, H, W)."""
    B, C, H, W = x.shape
    HW = H * W
    x_flat = x.reshape(B, C, HW)

    # Row-block the output/query-channel axis: more parallel grid points for
    # megacore at small B, smaller per-step intermediates at large C.
    if C % 256 == 0:
        row_tile = 256
    elif C % 128 == 0:
        row_tile = 128
    else:
        row_tile = C          # tiny / ragged C: single row block (full dim is legal)
    num_row_blocks = C // row_tile

    # VMEM budget estimate (bytes): input tile (double-buffered) + output slab
    # (double-buffered) + live intermediates.  Only raise the scoped limit when
    # the ~32 MiB default is not enough; cap at v7x's 64 MiB physical per-TC.
    f32 = 4
    est = (2 * C * HW + 2 * row_tile * HW + row_tile * HW + 3 * row_tile * C) * f32
    compiler_kwargs = dict(dimension_semantics=("parallel", "parallel"))
    if est > 32 * 1024 * 1024:
        compiler_kwargs["vmem_limit_bytes"] = min(int(est * 1.25), 64 * 1024 * 1024)
    # TODO(synk): for production sizes whose working set exceeds ~64 MiB (v7x),
    # tile the HW axis (accumulate the Gram matrix over HW chunks, then apply
    # p @ feat chunk-by-chunk) instead of keeping the full (C, HW) tile resident.

    kernel = functools.partial(_channel_attention_kernel, row_tile=row_tile)

    out_flat = pl.pallas_call(
        kernel,
        out_shape=jax.ShapeDtypeStruct((B, C, HW), x.dtype),
        grid_spec=pltpu.PrefetchScalarGridSpec(
            num_scalar_prefetch=0,
            grid=(B, num_row_blocks),
            in_specs=[
                pl.BlockSpec(memory_space=pltpu.SMEM),               # beta (1,)
                pl.BlockSpec((1, C, HW), lambda b, r: (b, 0, 0)),    # full batch tile
            ],
            out_specs=pl.BlockSpec((1, row_tile, HW), lambda b, r: (b, r, 0)),
        ),
        compiler_params=pltpu.CompilerParams(**compiler_kwargs),
    )(beta, x_flat)

    return out_flat.reshape(B, C, H, W)


def _reference(x, beta):
    """Pure-JAX reference matching the PyTorch forward exactly (f32 end to end)."""
    B, C, H, W = x.shape
    feat_a = x.reshape(B, C, H * W)
    attention = jnp.einsum("bcn,bdn->bcd", feat_a, feat_a)
    attention_new = jnp.max(attention, axis=-1, keepdims=True) - attention
    attention = jax.nn.softmax(attention_new, axis=-1)
    feat_e = jnp.einsum("bcd,bdn->bcn", attention, feat_a).reshape(B, C, H, W)
    return beta[0] * feat_e + x


if __name__ == "__main__":
    key = jax.random.PRNGKey(0)
    B, C, H, W = 2, 4, 16, 16
    x = jax.random.normal(key, (B, C, H, W), dtype=jnp.float32)

    # nn.Parameter(torch.zeros(1)) -> deterministic zero init (fast path),
    # plus a nonzero beta so the attention path is actually exercised.
    beta_zero = jnp.zeros((1,), dtype=jnp.float32)
    beta_test = jnp.array([0.5], dtype=jnp.float32)

    out0 = jax.block_until_ready(channel_attention_module(x, beta_zero))
    out1 = jax.block_until_ready(channel_attention_module(x, beta_test))

    ref0 = _reference(x, beta_zero)
    ref1 = _reference(x, beta_test)

    # beta == 0 path is an exact copy; attention path uses bf16 operands for the
    # p @ feat matmul and the EUP approximate reciprocal -> relaxed tolerance.
    assert jnp.allclose(out0, ref0, atol=1e-5, rtol=1e-5), "mismatch (beta=0)"
    assert jnp.allclose(out1, ref1, atol=2e-2, rtol=2e-2), "mismatch (beta=0.5)"

    print("KERNEL_OK")
</pallas_src>

<mosaic_0001>
module attributes {stable_mosaic.version = 11 : i64} {
  func.func @_channel_attention_kernel(%arg0: i32, %arg1: i32, %arg2: memref<1xf32, #tpu.memory_space<smem>>, %arg3: memref<1x4x256xf32, #tpu.memory_space<vmem>>, %arg4: memref<1x4x256xf32, #tpu.memory_space<vmem>>) attributes {dimension_semantics = [#tpu.dimension_semantics<parallel>, #tpu.dimension_semantics<parallel>], iteration_bounds = array<i64: 2, 1>, scalar_prefetch = 0 : i64, scratch_operands = 0 : i64, tpu.core_type = #tpu.core_type<tc>, window_params = [{transform_indices = @transform_0, window_bounds = array<i64: 1>}, {transform_indices = @transform_1, window_bounds = array<i64: 1, 4, 256>}, {transform_indices = @transform_2, window_bounds = array<i64: 1, 4, 256>}]} {
    %c4_i32 = arith.constant 4 : i32
    %0 = arith.muli %arg1, %c4_i32 : i32
    %1 = tpu.assume_multiple %0, 4 : i32
    %c0 = arith.constant 0 : index
    %2 = memref.load %arg2[%c0] : memref<1xf32, #tpu.memory_space<smem>>
    %cst = arith.constant 0.000000e+00 : f32
    %3 = arith.cmpf oeq, %2, %cst : f32
    %4 = arith.extui %3 : i1 to i32
    %c0_i32 = arith.constant 0 : i32
    %5 = arith.cmpi ne, %4, %c0_i32 : i32
    scf.if %5 {
      %c0_2 = arith.constant 0 : index
      %9 = arith.index_cast %1 : i32 to index
      %c0_3 = arith.constant 0 : index
      %10 = vector.load %arg3[%c0_2, %9, %c0_3] : memref<1x4x256xf32, #tpu.memory_space<vmem>>, vector<1x4x256xf32>
      %11 = vector.shape_cast %10 : vector<1x4x256xf32> to vector<4x256xf32>
      %c0_4 = arith.constant 0 : index
      %c0_5 = arith.constant 0 : index
      %c0_6 = arith.constant 0 : index
      %12 = vector.load %arg4[%c0_4, %c0_5, %c0_6] : memref<1x4x256xf32, #tpu.memory_space<vmem>>, vector<1x4x256xf32>
      %13 = vector.shape_cast %12 : vector<1x4x256xf32> to vector<4x256xf32>
      %14 = vector.shape_cast %11 : vector<4x256xf32> to vector<1x4x256xf32>
      tpu.vector_store %arg4[%c0_4, %c0_5, %c0_6], %14 {strides = array<i32>} : memref<1x4x256xf32, #tpu.memory_space<vmem>>, vector<1x4x256xf32>,
    } else {
    }
    %cst_0 = arith.constant 0.000000e+00 : f32
    %6 = arith.cmpf one, %2, %cst_0 : f32
    %7 = arith.extui %6 : i1 to i32
    %c0_i32_1 = arith.constant 0 : i32
    %8 = arith.cmpi ne, %7, %c0_i32_1 : i32
    scf.if %8 {
      %c0_2 = arith.constant 0 : index
      %c0_3 = arith.constant 0 : index
      %c0_4 = arith.constant 0 : index
      %9 = vector.load %arg3[%c0_2, %c0_3, %c0_4] : memref<1x4x256xf32, #tpu.memory_space<vmem>>, vector<1x4x256xf32>
      %10 = vector.shape_cast %9 : vector<1x4x256xf32> to vector<4x256xf32>
      %c0_5 = arith.constant 0 : index
      %11 = arith.index_cast %1 : i32 to index
      %c0_6 = arith.constant 0 : index
      %12 = vector.load %arg3[%c0_5, %11, %c0_6] : memref<1x4x256xf32, #tpu.memory_space<vmem>>, vector<1x4x256xf32>
      %13 = vector.shape_cast %12 : vector<1x4x256xf32> to vector<4x256xf32>
      %cst_7 = arith.constant dense<0.000000e+00> : vector<4x4xf32>
      %14 = tpu.matmul %13, %10, %cst_7 {dimension_numbers = #tpu.dot_dimension_numbers<[1], [1], [0], [0], [0, 0, 1, 0], [], []>} : vector<4x256xf32>, vector<4x256xf32>, vector<4x4xf32> -> vector<4x4xf32>
      %cst_8 = arith.constant dense<0x7F800000> : vector<4xf32>
      %15 = vector.multi_reduction <minimumf>, %14, %cst_8 [1] : vector<4x4xf32> to vector<4xf32>
      %16 = vector.shape_cast %15 : vector<4xf32> to vector<4x1xf32>
      %17 = vector.broadcast %16 : vector<4x1xf32> to vector<4x4xf32>
      %18 = arith.subf %17, %14 : vector<4x4xf32>
      %19 = math.exp %18 : vector<4x4xf32>
      %cst_9 = arith.constant dense<0.000000e+00> : vector<4xf32>
      %20 = vector.multi_reduction <add>, %19, %cst_9 [1] : vector<4x4xf32> to vector<4xf32>
      %21 = vector.shape_cast %20 : vector<4xf32> to vector<4x1xf32>
      %22 = tpu.reciprocal %21 {approx = true} : vector<4x1xf32> -> vector<4x1xf32>
      %23 = vector.broadcast %22 : vector<4x1xf32> to vector<4x4xf32>
      %24 = arith.mulf %19, %23 : vector<4x4xf32>
      %25 = arith.truncf %24 : vector<4x4xf32> to vector<4x4xbf16>
      %26 = arith.truncf %10 : vector<4x256xf32> to vector<4x256xbf16>
      %cst_10 = arith.constant dense<0.000000e+00> : vector<4x256xf32>
      %27 = tpu.matmul %25, %26, %cst_10 {dimension_numbers = #tpu.dot_dimension_numbers<[1], [0], [0], [1], [0, 0, 1, 1], [], []>} : vector<4x4xbf16>, vector<4x256xbf16>, vector<4x256xf32> -> vector<4x256xf32>
      %28 = vector.broadcast %2 : f32 to vector<4x256xf32>
      %29 = arith.mulf %28, %27 : vector<4x256xf32>
      %30 = arith.addf %29, %13 : vector<4x256xf32>
      %c0_11 = arith.constant 0 : index
      %c0_12 = arith.constant 0 : index
      %c0_13 = arith.constant 0 : index
      %31 = vector.load %arg4[%c0_11, %c0_12, %c0_13] : memref<1x4x256xf32, #tpu.memory_space<vmem>>, vector<1x4x256xf32>
      %32 = vector.shape_cast %31 : vector<1x4x256xf32> to vector<4x256xf32>
      %33 = vector.shape_cast %30 : vector<4x256xf32> to vector<1x4x256xf32>
      tpu.vector_store %arg4[%c0_11, %c0_12, %c0_13], %33 {strides = array<i32>} : memref<1x4x256xf32, #tpu.memory_space<vmem>>, vector<1x4x256xf32>,
    } else {
    }
    return
  }
  func.func @transform_0(%arg0: i32, %arg1: i32) -> i32 {
    %c0_i32 = arith.constant 0 : i32
    %c0_i32_0 = arith.constant 0 : i32
    return %c0_i32 : i32
  }
  func.func @transform_1(%arg0: i32, %arg1: i32) -> (i32, i32, i32) {
    %c0_i32 = arith.constant 0 : i32
    %c0_i32_0 = arith.constant 0 : i32
    %c0_i32_1 = arith.constant 0 : i32
    return %arg0, %c0_i32, %c0_i32_0 : i32, i32, i32
  }
  func.func @transform_2(%arg0: i32, %arg1: i32) -> (i32, i32, i32) {
    %c0_i32 = arith.constant 0 : i32
    %c0_i32_0 = arith.constant 0 : i32
    return %arg0, %arg1, %c0_i32 : i32, i32, i32
  }
}

</mosaic_0001>

<llo_original>
// kernel: tpu_custom_call.1
$region0: #{tpu_custom_call.1}
  #allocation0 [shape = 'u32[]', space=smem, size = 0x4, offset = 0x4, fixed_abs, tag = 'smem constant byte address 0x4 - core index']
  #allocation1 [shape = 'u32[144,128]{1,0:T(1,128)}', space=vmem, size = 0x12000, scoped, tag = 'internal scratch']
  #allocation2 [shape = 'f32[1]{0:T(128)S(6)}', space=smem, size = 0x200, scoped, tag = 'scoped memory for tpu_custom_call.1']
  %s0 = inlined_call_operand.<no memory space> [shape: f32[1], index: 0, kind: input, shape index: {}]
  %s1 = inlined_call_operand.hbm [shape: f32[2,4,256], index: 1, kind: input, shape index: {}]
  %s2 = inlined_call_operand.hbm [shape: f32[2,4,256], index: 2, kind: output, shape index: {}]
  %s3 = sld [smem:[#allocation0]]
  $region53: #{tpu_custom_call.1} parent=0
    _
  %s5 = ssub.s32 1, %s3
  %s6 = scalar_select 0, %s5, %s3
  %7 = sst [smem:[#allocation2]] %s0
  $region1: #{tpu_custom_call.1} parent=0
    #allocation3 [shape = 'u8[8192]{0}', space=vmem, size = 0x2000, scoped, tag = 'input window, operand 1']
    #allocation4 [shape = 's32[2]{0}', space=sflag, size = 0x8, scoped, tag = 'scoped memory for tpu_custom_call.1']
    #allocation5 [shape = 's32[2]{0}', space=sflag, size = 0x8, scoped, tag = 'scoped memory for tpu_custom_call.1']
    #allocation6 [shape = 'u8[8192]{0}', space=vmem, size = 0x2000, scoped, tag = 'output window, operand 0']
    %8 = vsyncpa [#allocation4], 0
    %s9 = scalar_lea.sflag [#allocation4], 1
    %10 = vsyncpa %s9, 0
    %11 = vsyncpa [#allocation5], 0
    %s12 = scalar_lea.sflag [#allocation5], 1
    %13 = vsyncpa %s12, 0
    loop: start=0, step=1, limit=4
    $region2: #{tpu_custom_call.1} parent=1 // loop_pre_header
      _
    $region3: #{tpu_custom_call.1} parent=1 // loop_header
      %s15 = sphi 0, %s19
      %p16 = scmp.ge.s32.totalorder %s15, 4
      %s22 = sphi 0, %s34
      %s23 = sphi 0, %s30
      %s24 = sphi 0, %s22
      %s25 = sphi 0, %s23
      %s26 = sphi 0, %s24
      %s27 = sphi 0, %s25
      %s35 = sphi 0, %s35
      %s37 = sphi 0, %s35
      %s38 = sphi 0, %s37
      %s52 = sphi 0, %s38
      %s58 = sphi 0, %s60
      %s61 = sphi 0, %s58
      %s62 = sphi 0, %s61
      %s78 = sphi 0, %s62
      %s86 = sphi 0, %s88
      %s89 = sphi 0, %s86
      %s90 = sphi 0, %s89
      %s106 = sphi 0, %s90
    $region4: #{tpu_custom_call.1} parent=1 // loop_header_branch
      %18 = sbr.rel (%p16) target = $region8
    $region5: #{tpu_custom_call.1} parent=1 // loop_body
      %s20 = ssub.s32 %s15, 1
      %s21 = ssub.s32 %s15, 2
      %s28 = sadd.s32 1, %s23
      %p29 = scmp.ge.s32.totalorder %s28, 1
      %s30 = scalar_select %p29, 0, %s28
      %s31 = sadd.s32 1, %s22
      %s32 = scalar_select %p29, %s31, %s22
      %p33 = scmp.ge.s32.totalorder %s32, 2
      %s34 = scalar_select %p33, 0, %s32
      %s36 = sadd.s32 %s35, 1
      %p39 = scmp.eq.s32.totalorder %s15, 1
      %p40 = scmp.ne.s32.totalorder %s35, %s37
      %p41 = scmp.eq.s32.totalorder %s15, 0
      %p42 = por %p40, %p41
      %p43 = scmp.ne.s32.totalorder %s35, %s37
      %p44 = scmp.eq.s32.totalorder %s20, 1
      %p45 = por %p43, %p44
      %p46 = scmp.ne.s32.totalorder %s37, %s38
      %p47 = scmp.eq.s32.totalorder %s20, 0
      %p48 = por %p46, %p47
      %p49 = scmp.ne.s32.totalorder %s37, %s38
      %p50 = scmp.eq.s32.totalorder %s21, 1
      %p51 = por %p49, %p50
      %p53 = scmp.ne.s32.totalorder %s38, %s52
      %p54 = scmp.eq.s32.totalorder %s21, 0
      %p55 = por %p53, %p54
      %s56 = ssub.s32 %s22, %s34
      %p57 = scmp.eq.s32.totalorder %s56, 0
      %s59 = sadd.s32 %s58, 1
      %s60 = scalar_select %p57, %s58, %s59
      %p63 = pneg %p57
      %p64 = scmp.eq.s32.totalorder %s15, 1
      %p65 = por %p63, %p64
      %p66 = scmp.ne.s32.totalorder %s58, %s61
      %p67 = scmp.eq.s32.totalorder %s15, 0
      %p68 = por %p66, %p67
      %p69 = scmp.ne.s32.totalorder %s58, %s61
      %p70 = scmp.eq.s32.totalorder %s20, 1
      %p71 = por %p69, %p70
      %p72 = scmp.ne.s32.totalorder %s61, %s62
      %p73 = scmp.eq.s32.totalorder %s20, 0
      %p74 = por %p72, %p73
      %p75 = scmp.ne.s32.totalorder %s61, %s62
      %p76 = scmp.eq.s32.totalorder %s21, 1
      %p77 = por %p75, %p76
      %p79 = scmp.ne.s32.totalorder %s62, %s78
      %p80 = scmp.eq.s32.totalorder %s21, 0
      %p81 = por %p79, %p80
      %s82 = ssub.s32 %s22, %s34
      %s83 = ssub.s32 %s23, %s30
      %s84 = sor.u32 %s82, %s83
      %p85 = scmp.eq.s32.totalorder %s84, 0
      %s87 = sadd.s32 %s86, 1
      %s88 = scalar_select %p85, %s86, %s87
      %p91 = pneg %p85
      %p92 = scmp.eq.s32.totalorder %s15, 1
      %p93 = por %p91, %p92
      %p94 = scmp.ne.s32.totalorder %s86, %s89
      %p95 = scmp.eq.s32.totalorder %s15, 0
      %p96 = por %p94, %p95
      %p97 = scmp.ne.s32.totalorder %s86, %s89
      %p98 = scmp.eq.s32.totalorder %s20, 1
      %p99 = por %p97, %p98
      %p100 = scmp.ne.s32.totalorder %s89, %s90
      %p101 = scmp.eq.s32.totalorder %s20, 0
      %p102 = por %p100, %p101
      %p103 = scmp.ne.s32.totalorder %s89, %s90
      %p104 = scmp.eq.s32.totalorder %s21, 1
      %p105 = por %p103, %p104
      %p107 = scmp.ne.s32.totalorder %s90, %s106
      %p108 = scmp.eq.s32.totalorder %s21, 0
      %p109 = por %p107, %p108
      %p110 = scmp.le.s32.totalorder 1, %s15
      %p111 = scmp.lt.s32.totalorder %s15, 3
      %p112 = pnand %p110, %p111
      %p113 = pneg %p112
      // Predicated region
      $region9: #{tpu_custom_call.1} parent=5 // pred_check
        _
      $region10: #{tpu_custom_call.1} parent=5 // pred_check_branch
        %115 = sbr.rel (%p112) target = $region12
      $region11: #{tpu_custom_call.1} parent=5 // pred_region
        %s116 = ssub.s32 %s15, 1
        // Predicated region
        $region13: #{tpu_custom_call.1} parent=11 // pred_check
          %p117 = pneg %p48
        $region14: #{tpu_custom_call.1} parent=11 // pred_check_branch
          %119 = sbr.rel (%p117) target = $region16
        $region15: #{tpu_custom_call.1} parent=11 // pred_region
          _
        $region16: #{tpu_custom_call.1} parent=11 // pred_fallthru
          _
      $region12: #{tpu_custom_call.1} parent=5 // pred_fallthru
        _
      %p120 = scmp.lt.s32.totalorder %s15, 2
      // Predicated region
      $region17: #{tpu_custom_call.1} parent=5 // pred_check
        %p121 = pneg %p120
      $region18: #{tpu_custom_call.1} parent=5 // pred_check_branch
        %123 = sbr.rel (%p121) target = $region20
      $region19: #{tpu_custom_call.1} parent=5 // pred_region
        // Predicated region
        $region21: #{tpu_custom_call.1} parent=19 // pred_check
          %p124 = pneg %p68
        $region22: #{tpu_custom_call.1} parent=19 // pred_check_branch
          %126 = sbr.rel (%p124) target = $region24
        $region23: #{tpu_custom_call.1} parent=19 // pred_region
          %s127 = sand.u32 %s58, 1
          %s128 = scalar_lea.sflag [#allocation4], %s127
          %s129 = sand.u32 %s58, 1
          %s130 = smul.addr %s129, 8
          %s131 = scalar_lea.vmem [#allocation3], %s130
          %s133 = ssub.s32 128, 128
          %134 = vsyncadd %s128, %s133
          %s135 = smul.addr %s22, 2
          %s136 = smul.addr %s135, 64
          %s137 = scalar_lea.hbm %s1, %s136
          %s139 = sshll.u32 %s131, 4
          %s140 = int_to_ptr.vmem [resolvable:$true] %s139
          %142 = dma.hbm_to_vmem [thread:$0]  %s137, 128, %s140, %s128
        $region24: #{tpu_custom_call.1} parent=19 // pred_fallthru
          _
      $region20: #{tpu_custom_call.1} parent=5 // pred_fallthru
        _
      %p143 = scmp.le.s32.totalorder 1, %s15
      %p144 = scmp.lt.s32.totalorder %s15, 3
      %p145 = pnand %p143, %p144
      %p146 = pneg %p145
      // Predicated region
      $region25: #{tpu_custom_call.1} parent=5 // pred_check
        _
      $region26: #{tpu_custom_call.1} parent=5 // pred_check_branch
        %148 = sbr.rel (%p145) target = $region28
      $region27: #{tpu_custom_call.1} parent=5 // pred_region
        %s149 = ssub.s32 %s15, 1
        %s150 = sand.u32 %s61, 1
        %s151 = scalar_lea.sflag [#allocation4], %s150
        %s152 = sand.u32 %s61, 1
        %s153 = smul.addr %s152, 8
        %s154 = scalar_lea.vmem [#allocation3], %s153
        // Predicated region
        $region29: #{tpu_custom_call.1} parent=27 // pred_check
          %p155 = pneg %p74
        $region30: #{tpu_custom_call.1} parent=27 // pred_check_branch
          %157 = sbr.rel (%p155) target = $region32
        $region31: #{tpu_custom_call.1} parent=27 // pred_region
          %158 = dma.done %s151, 128
        $region32: #{tpu_custom_call.1} parent=27 // pred_fallthru
          _
        %p159 = pneg %p48
        %p160 = pneg %p45
        %s161 = sand.u32 %s61, 1
        %s162 = scalar_lea.sflag [#allocation4], %s161
        %s163 = sand.u32 %s61, 1
        %s164 = smul.addr %s163, 8
        %s165 = scalar_lea.vmem [#allocation3], %s164
        %p166 = pneg %p74
        %p167 = pneg %p71
        %p168 = pneg %p102
        %p169 = pneg %p99
        %s170 = sand.u32 %s89, 1
        %s171 = scalar_lea.sflag [#allocation5], %s170
        %s172 = sand.u32 %s89, 1
        %s173 = smul.addr %s172, 8
        %s174 = scalar_lea.vmem [#allocation6], %s173
        %s176 = smul.u32 %s25, 4
        %s177 = sld [smem:[#allocation2]]
        %p178 = scmp.eq.f32.partialorder %s177, 0.0
        // Predicated region
        $region33: #{tpu_custom_call.1} parent=27 // pred_check
          %p179 = pneg %p178
        $region34: #{tpu_custom_call.1} parent=27 // pred_check_branch
          %181 = sbr.rel (%p179) target = $region36
        $region35: #{tpu_custom_call.1} parent=27 // pred_region
          %s182 = sshra.s32 %s176, 2
          %s183 = sand.u32 %s176, 3
          %s184 = smul.u32 %s182, 2
          %s185 = smul.addr %s184, 4
          %s186 = scalar_lea.vmem %s154, %s185 [#allocation3]
          %v187 = vld [vmem:[%s186] sm:$0xff]
          %188 = vst [vmem:[%s174] sm:$0xff] %v187
        $region36: #{tpu_custom_call.1} parent=27 // pred_fallthru
          _
        %p189 = scmp.ne.f32.partialorder %s177, 0.0
        // Predicated region
        $region37: #{tpu_custom_call.1} parent=27 // pred_check
          %p190 = pneg %p189
        $region38: #{tpu_custom_call.1} parent=27 // pred_check_branch
          %192 = sbr.rel (%p190) target = $region40
        $region39: #{tpu_custom_call.1} parent=27 // pred_region
          %v193 = vld [vmem:[%s154] sm:$0xff]
          %s194 = sshra.s32 %s176, 2
          %s195 = sand.u32 %s176, 3
          %s196 = smul.u32 %s194, 2
          %s197 = smul.addr %s196, 4
          %s198 = scalar_lea.vmem %s154, %s197 [#allocation3]
          %v199 = vld [vmem:[%s198] sm:$0xff]
          %v201 = vcombine.high %v199, %v199
          %v204 = vcombine.high %v193, %v193
          %206 = vmatprep.subr.mxu0 %v204
          %207 = vmatpush1.xpose.msra.mxu0 %v193
          %208 = vmatprep.subr.mxu0 0.0
          %209 = vmatpush1.xpose.msra.mxu0 0.0
          %210 = vmatprep.subr.mxu0 0.0
          %211 = vmatpush1.xpose.msra.mxu0 0.0
          %212 = vmatprep.subr.mxu0 0.0
          %213 = vmatpush1.xpose.msra.mxu0 0.0
          %214 = vmatprep.subr.mxu0 0.0
          %215 = vmatpush1.xpose.msra.mxu0 0.0
          %216 = vmatprep.subr.mxu0 0.0
          %217 = vmatpush1.xpose.msra.mxu0 0.0
          %218 = vmatprep.subr.mxu0 0.0
          %219 = vmatpush1.xpose.msra.mxu0 0.0
          %220 = vmatprep.subr.mxu0 0.0
          %221 = vmatpush1.xpose.msra.mxu0 0.0
          %222 = vmatprep.subr.mxu0 0.0
          %223 = vmatpush1.xpose.msra.mxu0 0.0
          %224 = vmatprep.subr.mxu0 0.0
          %225 = vmatpush1.xpose.msra.mxu0 0.0
          %226 = vmatprep.subr.mxu0 0.0
          %227 = vmatpush1.xpose.msra.mxu0 0.0
          %228 = vmatprep.subr.mxu0 0.0
          %229 = vmatpush1.xpose.msra.mxu0 0.0
          %230 = vmatprep.subr.mxu0 0.0
          %231 = vmatpush1.xpose.msra.mxu0 0.0
          %232 = vmatprep.subr.mxu0 0.0
          %233 = vmatpush1.xpose.msra.mxu0 0.0
          %234 = vmatprep.subr.mxu0 0.0
          %235 = vmatpush1.xpose.msra.mxu0 0.0
          %236 = vmatprep.subr.mxu0 0.0
          %237 = vmatpush1.xpose.msra.mxu0 0.0
          %238 = vmatprep.subr.mxu0 0.0
          %239 = vmatpush1.xpose.msra.mxu0 0.0
          %240 = vmatprep.subr.mxu0 0.0
          %241 = vmatpush1.xpose.msra.mxu0 0.0
          %242 = vmatprep.subr.mxu0 0.0
          %243 = vmatpush1.xpose.msra.mxu0 0.0
          %244 = vmatprep.subr.mxu0 0.0
          %245 = vmatpush1.xpose.msra.mxu0 0.0
          %246 = vmatprep.subr.mxu0 0.0
          %247 = vmatpush1.xpose.msra.mxu0 0.0
          %248 = vmatprep.subr.mxu0 0.0
          %249 = vmatpush1.xpose.msra.mxu0 0.0
          %250 = vmatprep.subr.mxu0 0.0
          %251 = vmatpush1.xpose.msra.mxu0 0.0
          %252 = vmatprep.subr.mxu0 0.0
          %253 = vmatpush1.xpose.msra.mxu0 0.0
          %254 = vmatprep.subr.mxu0 0.0
          %255 = vmatpush1.xpose.msra.mxu0 0.0
          %256 = vmatprep.subr.mxu0 0.0
          %257 = vmatpush1.xpose.msra.mxu0 0.0
          %258 = vmatprep.subr.mxu0 0.0
          %259 = vmatpush1.xpose.msra.mxu0 0.0
          %260 = vmatprep.subr.mxu0 0.0
          %261 = vmatpush1.xpose.msra.mxu0 0.0
          %262 = vmatprep.subr.mxu0 0.0
          %263 = vmatpush1.xpose.msra.mxu0 0.0
          %264 = vmatprep.subr.mxu0 0.0
          %265 = vmatpush1.xpose.msra.mxu0 0.0
          %266 = vmatprep.subr.mxu0 0.0
          %267 = vmatpush1.xpose.msra.mxu0 0.0
          %268 = vmatprep.subr.mxu0 0.0
          %269 = vmatpush1.xpose.msra.mxu0 0.0
          %270 = vmatprep.mubr.f32.mxu0 %v201
          %271 = vmatmul.mubr.f32.gmra.mrb[0].mxu0 %v199
          %v272 = vpop.f32.mrb[0].mxu0
          %v273 = vadd.f32 0.0, %v272
          %v274 = vpop.f32.mrb[0].mxu0
          %275 = vdwg.mxu0
          %vm276 = vcmask 27648
          %v277 = vsel %vm276, %v273, inf
          %278 = vmin.xlane.f32.xlu0 %v277
          %v279 = vpop.xlane.xlu0 %278
          %v280 = vsub.f32 %v279, %v273
          %v281 = vmul.f32 %v280, 1.442695
          %v282 = vpow.pop %v281
          %v283 = vsel %vm276, %v282, 0.0
          %284 = vadd.xlane.f32.xlu0 %v283
          %v285 = vpop.xlane.xlu0 %284
          %v286 = vrcp.pop %v285
          %v287 = vmul.f32 %v282, %v286
          %v288 = vpack.c.bf16 %v287, %v287
          %v289 = vpack.c.bf16 %v193, %v193
          %v290 = vpack.c.bf16 %v204, %v204
          %vm291 = vcmask 31744
          %v293 = vsel %vm291, %v288, 0
          %vm295 = vcmask 1041408
          %v297 = vsel %vm295, %v289, 0
          %v300 = vsel %vm295, %v290, 0
          %302 = vmatprep.subr.bf16.mxu0 %v300
          %303 = vmatpush1.bf16.msra.mxu0 %v297
          %304 = vmatprep.subr.bf16.mxu0 0
          %305 = vmatpush1.bf16.msra.mxu0 0
          %306 = vmatprep.subr.bf16.mxu0 0
          %307 = vmatpush1.bf16.msra.mxu0 0
          %308 = vmatprep.subr.bf16.mxu0 0
          %309 = vmatpush1.bf16.msra.mxu0 0
          %310 = vmatprep.subr.bf16.mxu0 0
          %311 = vmatpush1.bf16.msra.mxu0 0
          %312 = vmatprep.subr.bf16.mxu0 0
          %313 = vmatpush1.bf16.msra.mxu0 0
          %314 = vmatprep.subr.bf16.mxu0 0
          %315 = vmatpush1.bf16.msra.mxu0 0
          %316 = vmatprep.subr.bf16.mxu0 0
          %317 = vmatpush1.bf16.msra.mxu0 0
          %318 = vmatprep.subr.bf16.mxu0 0
          %319 = vmatpush1.bf16.msra.mxu0 0
          %320 = vmatprep.subr.bf16.mxu0 0
          %321 = vmatpush1.bf16.msra.mxu0 0
          %322 = vmatprep.subr.bf16.mxu0 0
          %323 = vmatpush1.bf16.msra.mxu0 0
          %324 = vmatprep.subr.bf16.mxu0 0
          %325 = vmatpush1.bf16.msra.mxu0 0
          %326 = vmatprep.subr.bf16.mxu0 0
          %327 = vmatpush1.bf16.msra.mxu0 0
          %328 = vmatprep.subr.bf16.mxu0 0
          %329 = vmatpush1.bf16.msra.mxu0 0
          %330 = vmatprep.subr.bf16.mxu0 0
          %331 = vmatpush1.bf16.msra.mxu0 0
          %332 = vmatprep.subr.bf16.mxu0 0
          %333 = vmatpush1.bf16.msra.mxu0 0
          %334 = vmatprep.mubr.bf16.mxu0 0
          %335 = vmatmul.mubr.bf16.gmra.mrb[0].mxu0 %v293
          %v336 = vpop.f32.mrb[0].mxu0
          %v337 = vadd.f32 0.0, %v336
          %v338 = vpop.f32.mrb[0].mxu0
          %v339 = vadd.f32 0.0, %v338
          %v340 = vpop.f32.mrb[0].mxu0
          %v341 = vpop.f32.mrb[0].mxu0
          %342 = vdwg.mxu0
          %v343 = vstv %s177
          %v344 = vmul.f32 %v343, %v337
          %v345 = vmul.f32 %v343, %v339
          %v346 = vadd.f32 %v344, %v199
          %v347 = vadd.f32 %v345, %v201
          %v350 = vcombine.low %v346, %v347
          %352 = vst [vmem:[%s174] sm:$0xff] %v350
        $region40: #{tpu_custom_call.1} parent=27 // pred_fallthru
          _
        %s353 = sand.u32 %s89, 1
        %s354 = scalar_lea.sflag [#allocation5], %s353
        %s355 = sand.u32 %s89, 1
        %s356 = smul.addr %s355, 8
        %s357 = scalar_lea.vmem [#allocation6], %s356
        // Predicated region
        $region41: #{tpu_custom_call.1} parent=27 // pred_check
          %p358 = pneg %p99
        $region42: #{tpu_custom_call.1} parent=27 // pred_check_branch
          %360 = sbr.rel (%p358) target = $region44
        $region43: #{tpu_custom_call.1} parent=27 // pred_region
          %s362 = ssub.s32 128, 128
          %363 = vsyncadd %s354, %s362
          %s364 = smul.addr %s25, 2
          %s365 = smul.addr %s24, 2
          %s366 = sadd.s32 %s364, %s365
          %s367 = smul.addr %s366, 64
          %s368 = scalar_lea.hbm %s2, %s367
          %s370 = sshll.u32 %s357, 4
          %s371 = int_to_ptr.vmem [resolvable:$true] %s370
          %373 = dma.vmem_to_hbm [thread:$0]  %s371, 128, %s368, %s354
        $region44: #{tpu_custom_call.1} parent=27 // pred_fallthru
          _
      $region28: #{tpu_custom_call.1} parent=5 // pred_fallthru
        _
      %p374 = scmp.le.s32.totalorder 2, %s15
      // Predicated region
      $region45: #{tpu_custom_call.1} parent=5 // pred_check
        %p375 = pneg %p374
      $region46: #{tpu_custom_call.1} parent=5 // pred_check_branch
        %377 = sbr.rel (%p375) target = $region48
      $region47: #{tpu_custom_call.1} parent=5 // pred_region
        %s378 = ssub.s32 %s15, 2
        // Predicated region
        $region49: #{tpu_custom_call.1} parent=47 // pred_check
          %p379 = pneg %p105
        $region50: #{tpu_custom_call.1} parent=47 // pred_check_branch
          %381 = sbr.rel (%p379) target = $region52
        $region51: #{tpu_custom_call.1} parent=47 // pred_region
          %s382 = sand.u32 %s90, 1
          %s383 = scalar_lea.sflag [#allocation5], %s382
          %s384 = sand.u32 %s90, 1
          %s385 = smul.addr %s384, 8
          %s386 = scalar_lea.vmem [#allocation6], %s385
          %387 = dma.done %s383, 128
        $region52: #{tpu_custom_call.1} parent=47 // pred_fallthru
          _
      $region48: #{tpu_custom_call.1} parent=5 // pred_fallthru
        _
    $region6: #{tpu_custom_call.1} parent=1 // loop_footer
      %s19 = sadd.s32 1, %s15
    $region7: #{tpu_custom_call.1} parent=1 // loop_footer_branch
      %14 = sbr.rel target = $region3
    $region8: #{tpu_custom_call.1} parent=1 // loop_exit
      _
    %388 = vsyncpa [#allocation4], 1
    %s389 = scalar_lea.sflag [#allocation4], 1
    %390 = vsyncpa %s389, 1
    %391 = vsyncpa [#allocation5], 1
    %s392 = scalar_lea.sflag [#allocation5], 1
    %393 = vsyncpa %s392, 1

</llo_original>
